<compile_context>
chip_gen: v5e
topology: v5e:2x2
jax: 0.10.0
libtpu: 0.0.40
codegen_flags: <defaults>
</compile_context>

<pallas_src>
import jax
import jax.numpy as jnp
from jax import lax
from jax.experimental import pallas as pl
from jax.experimental.pallas import tpu as pltpu


def _sublane_packing(itemsize):
    """Sublane multiple per dtype width: f32 -> 8, bf16 -> 16, int8/fp8 -> 32."""
    return 8 * max(1, 4 // max(1, itemsize))


def _vmem_capacity_bytes():
    """Physical per-core VMEM; conservative 64 MiB fallback (v7x-sized)."""
    try:
        info = pltpu.get_tpu_info()
        cap = getattr(info, "vmem_capacity_bytes", None)
        if cap:
            return int(cap)
    except Exception:
        pass
    return 64 << 20


def _choose_block_s(S, D, itemsize, budget_bytes):
    """Largest sequence tile whose double-buffered x footprint fits the budget.
    Prefers multiples of 256, then 128, then the dtype sublane packing."""
    pack = _sublane_packing(itemsize)
    bytes_per_row = max(1, D * itemsize)
    rows_cap = int(budget_bytes // (2 * bytes_per_row))
    if rows_cap >= S:
        return S                       # whole sequence in one resident block
    for unit in (256, 128, pack):
        bs = (rows_cap // unit) * unit
        if bs >= unit:
            return bs
    # Very wide D: even one packing-multiple tile exceeds the budget;
    # vmem_limit_bytes is sized from the actual footprint in the wrapper.
    # TODO(synk): tile D as well in this regime.
    return pack


def _make_attention_kernel(S, bs, ragged):
    def kernel(x_ref, w_ref, o_ref, m_sc, l_sc, acc_sc):
        # x_ref: (bs, D) sequence tile; w_ref: (1, D) weight row (x.dtype)
        # o_ref: (1, D) output row (resident across the grid)
        # m_sc/l_sc: (1,1) running max / softmax denominator (f32)
        # acc_sc:   (1, D) running unnormalized weighted sum (f32)
        step = pl.program_id(0)

        @pl.when(step == 0)
        def _init():
            m_sc[...] = jnp.full(m_sc.shape, -jnp.inf, dtype=jnp.float32)
            l_sc[...] = jnp.zeros(l_sc.shape, dtype=jnp.float32)
            acc_sc[...] = jnp.zeros(acc_sc.shape, dtype=jnp.float32)

        x = x_ref[...]                                   # (bs, D), native dtype
        w = w_ref[...]                                   # (1, D), same dtype

        if ragged:
            # Zero out-of-range rows so the weighted-sum matmul sees finite
            # data in the padded tail block.
            row_idx = step * bs + lax.broadcasted_iota(jnp.int32, (bs, 1), 0)
            x = jnp.where(row_idx < S, x, 0)

        # Scores, lane-major: contract D of (1,D) with D of (bs,D) -> (1,bs).
        s = lax.dot_general(
            w, x,
            dimension_numbers=(((1,), (1,)), ((), ())),
            preferred_element_type=jnp.float32)          # (1, bs), f32

        if ragged:
            # Pad lanes get -inf so they contribute exp(.)=0 to l and acc.
            lane_idx = step * bs + lax.broadcasted_iota(jnp.int32, (1, bs), 1)
            s = jnp.where(lane_idx < S, s, -jnp.inf)

        # Online softmax over the sequence axis (lanes of s).
        m_prev = m_sc[...]                                           # (1,1)
        m_new = jnp.maximum(m_prev, jnp.max(s, axis=1, keepdims=True))
        corr = jnp.exp(m_prev - m_new)                               # (1,1)
        e = jnp.exp(s - m_new)                                       # (1,bs)

        # Unnormalized weighted sum of this tile on the MXU: (1,bs)@(bs,D).
        part = jnp.dot(e.astype(x.dtype), x,
                       preferred_element_type=jnp.float32)           # (1,D)

        l_sc[...] = corr * l_sc[...] + jnp.sum(e, axis=1, keepdims=True)
        acc_sc[...] = corr * acc_sc[...] + part
        m_sc[...] = m_new

        @pl.when(step == pl.num_programs(0) - 1)
        def _finalize():
            # One normalization of the (1,D) accumulator; runs once per call.
            inv_l = pl.reciprocal(l_sc[...], approx=False)
            o_ref[...] = (acc_sc[...] * inv_l).astype(o_ref.dtype)

    return kernel


def attention_module(x, w, b=None, *, max_block_s=None):
    """x: (S, D); w: Linear(D,1) weight as (1,D)/(D,1)/(D,); b: bias (ignored:
    softmax over dim=0 cancels a per-row-constant shift).  Returns (D,) f32."""
    del b  # mathematically exact no-op under softmax over the sequence axis
    x = jnp.asarray(x)
    S, D = x.shape
    w_row = jnp.asarray(w).reshape(1, D).astype(x.dtype)   # pre-cast once
    itemsize = jnp.dtype(x.dtype).itemsize

    vmem_cap = _vmem_capacity_bytes()
    # ~50-60% of VMEM for the streamed x buffers, capped for v7x's 64 MiB.
    budget = min(int(vmem_cap * 0.6), 48 << 20)
    bs = _choose_block_s(S, D, itemsize, budget)
    if max_block_s is not None and max_block_s < bs:
        pack = _sublane_packing(itemsize)
        bs = max(pack, (max_block_s // pack) * pack)

    num_steps = (S + bs - 1) // bs
    ragged = (S % bs) != 0

    # 3-deep pipeline when tiles are small and the grid is long (hides the
    # per-step overhead on a mem-bound stream); double buffer otherwise.
    buf_count = 3 if (bs <= 256 and num_steps > 4) else 2
    x_spec = pl.BlockSpec((bs, D), lambda i: (i, 0))
    if buf_count == 3:
        try:
            x_spec = pl.BlockSpec((bs, D), lambda i: (i, 0),
                                  pipeline_mode=pl.Buffered(3))
        except TypeError:
            buf_count = 2

    # Always pass a vmem limit that covers the actual footprint.
    needed = (buf_count * bs * D * itemsize          # x stream buffers
              + 2 * D * itemsize                     # weight row (dbl-buffered)
              + 2 * D * 4                            # output row
              + D * 4 + 2 * 4)                       # acc / m / l scratch
    vmem_limit = int(min(max(int(needed * 1.3) + (2 << 20), 32 << 20), vmem_cap))

    out = pl.pallas_call(
        _make_attention_kernel(S, bs, ragged),
        out_shape=jax.ShapeDtypeStruct((1, D), jnp.float32),
        grid_spec=pltpu.PrefetchScalarGridSpec(
            num_scalar_prefetch=0,
            grid=(num_steps,),
            in_specs=[
                x_spec,                                    # x sequence tile
                pl.BlockSpec((1, D), lambda i: (0, 0)),    # weight row
            ],
            out_specs=pl.BlockSpec((1, D), lambda i: (0, 0)),
            scratch_shapes=[
                pltpu.VMEM((1, 1), jnp.float32),   # running max  m
                pltpu.VMEM((1, 1), jnp.float32),   # running sum  l
                pltpu.VMEM((1, D), jnp.float32),   # running weighted sum
            ],
        ),
        compiler_params=pltpu.CompilerParams(
            dimension_semantics=("arbitrary",),
            vmem_limit_bytes=vmem_limit,
        ),
    )(x, w_row)
    return out.reshape(D)


def attention_ref(x, w, b):
    # Pure-JAX reference of the PyTorch module, INCLUDING the bias, to show
    # that dropping it inside the kernel is exact.
    x = jnp.asarray(x, jnp.float32)
    w_row = jnp.asarray(w, jnp.float32).reshape(1, -1)
    scores = jnp.sum(x * w_row, axis=1, keepdims=True)
    scores = scores + jnp.asarray(b, jnp.float32).reshape(1, 1)
    alpha = jax.nn.softmax(scores, axis=0)
    return (x * alpha).sum(axis=0)


if __name__ == "__main__":
    # Small shapes matching the module: seq=8, feature_dim=32.
    S, D = 8, 32
    key = jax.random.PRNGKey(0)
    kx, kw, kb = jax.random.split(key, 3)

    x = jax.random.normal(kx, (S, D), dtype=jnp.float32)
    # Deterministic "nn.Linear(feature_dim, 1)" parameters
    # (weight layout matches PyTorch: (out_features=1, in_features=D)).
    w = jax.random.normal(kw, (1, D), dtype=jnp.float32) * (1.0 / jnp.sqrt(D))
    b = jax.random.normal(kb, (1,), dtype=jnp.float32) * 0.01

    out = attention_module(x, w, b)
    out = jax.block_until_ready(out)
    ref = attention_ref(x, w, b)
    assert out.shape == (D,)
    assert jnp.allclose(out, ref, atol=1e-5, rtol=1e-5), (out, ref)

    # Exercise the tiled grid + masked ragged-tail path (S not divisible by bs).
    S2, D2 = 300, 128
    k2x, k2w, k2b = jax.random.split(jax.random.PRNGKey(1), 3)
    x2 = jax.random.normal(k2x, (S2, D2), dtype=jnp.float32)
    w2 = jax.random.normal(k2w, (1, D2), dtype=jnp.float32) * (1.0 / jnp.sqrt(D2))
    b2 = jax.random.normal(k2b, (1,), dtype=jnp.float32) * 0.01
    out2 = jax.block_until_ready(attention_module(x2, w2, b2, max_block_s=128))
    ref2 = attention_ref(x2, w2, b2)
    assert out2.shape == (D2,)
    assert jnp.allclose(out2, ref2, atol=1e-5, rtol=1e-5), (out2, ref2)

    print("KERNEL_OK")
</pallas_src>

<mosaic_0001>
module attributes {stable_mosaic.version = 11 : i64} {
  func.func @kernel(%arg0: i32, %arg1: memref<8x32xf32, #tpu.memory_space<vmem>>, %arg2: memref<1x32xf32, #tpu.memory_space<vmem>>, %arg3: memref<1x32xf32, #tpu.memory_space<vmem>>, %arg4: memref<1x1xf32, #tpu.memory_space<vmem>>, %arg5: memref<1x1xf32, #tpu.memory_space<vmem>>, %arg6: memref<1x32xf32, #tpu.memory_space<vmem>>) attributes {dimension_semantics = [#tpu.dimension_semantics<arbitrary>], iteration_bounds = array<i64: 1>, scalar_prefetch = 0 : i64, scratch_operands = 3 : i64, tpu.core_type = #tpu.core_type<tc>, window_params = [{transform_indices = @transform_0, window_bounds = array<i64: 8, 32>}, {pipeline_mode = #tpu.pipeline_mode<synchronous>, transform_indices = @transform_1, window_bounds = array<i64: 1, 32>}, {pipeline_mode = #tpu.pipeline_mode<synchronous>, transform_indices = @transform_2, window_bounds = array<i64: 1, 32>}]} {
    %c0_i32 = arith.constant 0 : i32
    %0 = arith.cmpi eq, %arg0, %c0_i32 : i32
    %1 = arith.extui %0 : i1 to i32
    %c0_i32_0 = arith.constant 0 : i32
    %2 = arith.cmpi ne, %1, %c0_i32_0 : i32
    scf.if %2 {
      %cst_21 = arith.constant 0xFF800000 : f32
      %31 = vector.broadcast %cst_21 : f32 to vector<1x1xf32>
      %c0_22 = arith.constant 0 : index
      %c0_23 = arith.constant 0 : index
      %32 = vector.load %arg4[%c0_22, %c0_23] : memref<1x1xf32, #tpu.memory_space<vmem>>, vector<1x1xf32>
      tpu.vector_store %arg4[%c0_22, %c0_23], %31 {strides = array<i32>} : memref<1x1xf32, #tpu.memory_space<vmem>>, vector<1x1xf32>,
      %cst_24 = arith.constant 0.000000e+00 : f32
      %33 = vector.broadcast %cst_24 : f32 to vector<1x1xf32>
      %c0_25 = arith.constant 0 : index
      %c0_26 = arith.constant 0 : index
      %34 = vector.load %arg5[%c0_25, %c0_26] : memref<1x1xf32, #tpu.memory_space<vmem>>, vector<1x1xf32>
      tpu.vector_store %arg5[%c0_25, %c0_26], %33 {strides = array<i32>} : memref<1x1xf32, #tpu.memory_space<vmem>>, vector<1x1xf32>,
      %cst_27 = arith.constant 0.000000e+00 : f32
      %35 = vector.broadcast %cst_27 : f32 to vector<1x32xf32>
      %c0_28 = arith.constant 0 : index
      %c0_29 = arith.constant 0 : index
      %36 = vector.load %arg6[%c0_28, %c0_29] : memref<1x32xf32, #tpu.memory_space<vmem>>, vector<1x32xf32>
      tpu.vector_store %arg6[%c0_28, %c0_29], %35 {strides = array<i32>} : memref<1x32xf32, #tpu.memory_space<vmem>>, vector<1x32xf32>,
    } else {
    }
    %c0 = arith.constant 0 : index
    %c0_1 = arith.constant 0 : index
    %3 = vector.load %arg1[%c0, %c0_1] : memref<8x32xf32, #tpu.memory_space<vmem>>, vector<8x32xf32>
    %c0_2 = arith.constant 0 : index
    %c0_3 = arith.constant 0 : index
    %4 = vector.load %arg2[%c0_2, %c0_3] : memref<1x32xf32, #tpu.memory_space<vmem>>, vector<1x32xf32>
    %cst = arith.constant dense<0.000000e+00> : vector<1x8xf32>
    %5 = tpu.matmul %4, %3, %cst {dimension_numbers = #tpu.dot_dimension_numbers<[1], [1], [0], [0], [0, 0, 1, 0], [], []>} : vector<1x32xf32>, vector<8x32xf32>, vector<1x8xf32> -> vector<1x8xf32>
    %c0_4 = arith.constant 0 : index
    %c0_5 = arith.constant 0 : index
    %6 = vector.load %arg4[%c0_4, %c0_5] : memref<1x1xf32, #tpu.memory_space<vmem>>, vector<1x1xf32>
    %cst_6 = arith.constant dense<0xFF800000> : vector<1xf32>
    %7 = vector.multi_reduction <maximumf>, %5, %cst_6 [1] : vector<1x8xf32> to vector<1xf32>
    %8 = vector.shape_cast %7 : vector<1xf32> to vector<1x1xf32>
    %9 = arith.maximumf %6, %8 : vector<1x1xf32>
    %10 = arith.subf %6, %9 : vector<1x1xf32>
    %11 = math.exp %10 : vector<1x1xf32>
    %12 = vector.broadcast %9 : vector<1x1xf32> to vector<1x8xf32>
    %13 = arith.subf %5, %12 : vector<1x8xf32>
    %14 = math.exp %13 : vector<1x8xf32>
    %cst_7 = arith.constant dense<0.000000e+00> : vector<1x32xf32>
    %15 = tpu.matmul %14, %3, %cst_7 {dimension_numbers = #tpu.dot_dimension_numbers<[1], [0], [0], [1], [0, 0, 1, 1], [], []>} : vector<1x8xf32>, vector<8x32xf32>, vector<1x32xf32> -> vector<1x32xf32>
    %c0_8 = arith.constant 0 : index
    %c0_9 = arith.constant 0 : index
    %16 = vector.load %arg5[%c0_8, %c0_9] : memref<1x1xf32, #tpu.memory_space<vmem>>, vector<1x1xf32>
    %17 = arith.mulf %11, %16 : vector<1x1xf32>
    %cst_10 = arith.constant dense<0.000000e+00> : vector<1xf32>
    %18 = vector.multi_reduction <add>, %14, %cst_10 [1] : vector<1x8xf32> to vector<1xf32>
    %19 = vector.shape_cast %18 : vector<1xf32> to vector<1x1xf32>
    %20 = arith.addf %17, %19 : vector<1x1xf32>
    %c0_11 = arith.constant 0 : index
    %c0_12 = arith.constant 0 : index
    %21 = vector.load %arg5[%c0_11, %c0_12] : memref<1x1xf32, #tpu.memory_space<vmem>>, vector<1x1xf32>
    tpu.vector_store %arg5[%c0_11, %c0_12], %20 {strides = array<i32>} : memref<1x1xf32, #tpu.memory_space<vmem>>, vector<1x1xf32>,
    %c0_13 = arith.constant 0 : index
    %c0_14 = arith.constant 0 : index
    %22 = vector.load %arg6[%c0_13, %c0_14] : memref<1x32xf32, #tpu.memory_space<vmem>>, vector<1x32xf32>
    %23 = vector.broadcast %11 : vector<1x1xf32> to vector<1x32xf32>
    %24 = arith.mulf %23, %22 : vector<1x32xf32>
    %25 = arith.addf %24, %15 : vector<1x32xf32>
    %c0_15 = arith.constant 0 : index
    %c0_16 = arith.constant 0 : index
    %26 = vector.load %arg6[%c0_15, %c0_16] : memref<1x32xf32, #tpu.memory_space<vmem>>, vector<1x32xf32>
    tpu.vector_store %arg6[%c0_15, %c0_16], %25 {strides = array<i32>} : memref<1x32xf32, #tpu.memory_space<vmem>>, vector<1x32xf32>,
    %c0_17 = arith.constant 0 : index
    %c0_18 = arith.constant 0 : index
    %27 = vector.load %arg4[%c0_17, %c0_18] : memref<1x1xf32, #tpu.memory_space<vmem>>, vector<1x1xf32>
    tpu.vector_store %arg4[%c0_17, %c0_18], %9 {strides = array<i32>} : memref<1x1xf32, #tpu.memory_space<vmem>>, vector<1x1xf32>,
    %c0_i32_19 = arith.constant 0 : i32
    %28 = arith.cmpi eq, %arg0, %c0_i32_19 : i32
    %29 = arith.extui %28 : i1 to i32
    %c0_i32_20 = arith.constant 0 : i32
    %30 = arith.cmpi ne, %29, %c0_i32_20 : i32
    scf.if %30 {
      %c0_21 = arith.constant 0 : index
      %c0_22 = arith.constant 0 : index
      %31 = vector.load %arg5[%c0_21, %c0_22] : memref<1x1xf32, #tpu.memory_space<vmem>>, vector<1x1xf32>
      %32 = tpu.reciprocal %31 : vector<1x1xf32> -> vector<1x1xf32>
      %c0_23 = arith.constant 0 : index
      %c0_24 = arith.constant 0 : index
      %33 = vector.load %arg6[%c0_23, %c0_24] : memref<1x32xf32, #tpu.memory_space<vmem>>, vector<1x32xf32>
      %34 = vector.broadcast %32 : vector<1x1xf32> to vector<1x32xf32>
      %35 = arith.mulf %33, %34 : vector<1x32xf32>
      %c0_25 = arith.constant 0 : index
      %c0_26 = arith.constant 0 : index
      %36 = vector.load %arg3[%c0_25, %c0_26] : memref<1x32xf32, #tpu.memory_space<vmem>>, vector<1x32xf32>
      tpu.vector_store %arg3[%c0_25, %c0_26], %35 {strides = array<i32>} : memref<1x32xf32, #tpu.memory_space<vmem>>, vector<1x32xf32>,
    } else {
    }
    return
  }
  func.func @transform_0(%arg0: i32) -> (i32, i32) {
    %c0_i32 = arith.constant 0 : i32
    %c0_i32_0 = arith.constant 0 : i32
    return %arg0, %c0_i32 : i32, i32
  }
  func.func @transform_1(%arg0: i32) -> (i32, i32) {
    %c0_i32 = arith.constant 0 : i32
    %c0_i32_0 = arith.constant 0 : i32
    %c0_i32_1 = arith.constant 0 : i32
    return %c0_i32, %c0_i32_0 : i32, i32
  }
  func.func @transform_2(%arg0: i32) -> (i32, i32) {
    %c0_i32 = arith.constant 0 : i32
    %c0_i32_0 = arith.constant 0 : i32
    %c0_i32_1 = arith.constant 0 : i32
    return %c0_i32, %c0_i32_0 : i32, i32
  }
}

</mosaic_0001>

<llo_original>
// kernel: tpu_custom_call.1
$region0: #{tpu_custom_call.1}
  #allocation0 [shape = 'u32[]', space=smem, size = 0x4, offset = 0x4, fixed_abs, tag = 'smem constant byte address 0x4 - core index']
  #allocation1 [shape = 'u32[72,128]{1,0:T(1,128)}', space=vmem, size = 0x9000, scoped, tag = 'internal scratch']
  #allocation2 [shape = 'f32[1,1]{1,0:T(1,128)}', space=vmem, size = 0x200, scoped, tag = 'scratch operand']
  #allocation3 [shape = 'f32[1,1]{1,0:T(1,128)}', space=vmem, size = 0x200, scoped, tag = 'scratch operand']
  #allocation4 [shape = 'f32[1,32]{1,0:T(1,128)}', space=vmem, size = 0x200, scoped, tag = 'scratch operand']
  %s0 = inlined_call_operand.hbm [shape: f32[8,32], index: 0, kind: input, shape index: {}]
  %s1 = inlined_call_operand.hbm [shape: f32[1,32], index: 1, kind: input, shape index: {}]
  %s2 = inlined_call_operand.hbm [shape: f32[1,32], index: 2, kind: output, shape index: {}]
  %s3 = sld [smem:[#allocation0]]
  $region34: #{tpu_custom_call.1} parent=0
    _
  %s5 = ssub.s32 1, %s3
  %s6 = scalar_select 0, %s5, %s3
  $region1: #{tpu_custom_call.1} parent=0
    #allocation5 [shape = 'u8[4096]{0}', space=vmem, size = 0x1000, scoped, tag = 'input window, operand 0, single buffered']
    #allocation6 [shape = 's32[1]{0}', space=sflag, size = 0x4, scoped, tag = 'scoped memory for tpu_custom_call.1']
    #allocation7 [shape = 's32[1]{0}', space=sflag, size = 0x4, scoped, tag = 'scoped memory for tpu_custom_call.1']
    #allocation8 [shape = 'u8[512]{0}', space=vmem, size = 0x400, scoped, tag = 'input window, operand 1, single buffered']
    #allocation9 [shape = 's32[1]{0}', space=sflag, size = 0x4, scoped, tag = 'scoped memory for tpu_custom_call.1']
    #allocation10 [shape = 'u8[512]{0}', space=vmem, size = 0x400, scoped, tag = 'output window, operand 0, single buffered']
    %7 = vsyncpa [#allocation6], 0
    %8 = vsyncpa [#allocation9], 0
    %9 = vsyncpa [#allocation7], 0
    // Predicated region
    $region2: #{tpu_custom_call.1} parent=1 // pred_check
      _
    $region3: #{tpu_custom_call.1} parent=1 // pred_check_branch
      %11 = sbr.rel (0) target = $region5
    $region4: #{tpu_custom_call.1} parent=1 // pred_region
      %13 = vsyncadd [#allocation6], 0
      %s15 = sshll.u32 %s0, 4
      %s16 = int_to_ptr.hbm [resolvable:$true] %s15
      %s17 = sshll.u32 [#allocation5], 4
      %s18 = int_to_ptr.vmem [resolvable:$true] %s17
      %20 = dma.hbm_to_vmem [thread:$0]  %s16, 128, %s18, [#allocation6]
    $region5: #{tpu_custom_call.1} parent=1 // pred_fallthru
      _
    // Predicated region
    $region6: #{tpu_custom_call.1} parent=1 // pred_check
      _
    $region7: #{tpu_custom_call.1} parent=1 // pred_check_branch
      %22 = sbr.rel (0) target = $region9
    $region8: #{tpu_custom_call.1} parent=1 // pred_region
      %24 = vsyncadd [#allocation9], 0
      %s26 = sshll.u32 %s1, 4
      %s27 = int_to_ptr.hbm [resolvable:$true] %s26
      %s28 = sshll.u32 [#allocation8], 4
      %s29 = int_to_ptr.vmem [resolvable:$true] %s28
      %31 = dma.hbm_to_vmem [thread:$0]  %s27, 16, %s29, [#allocation9]
    $region9: #{tpu_custom_call.1} parent=1 // pred_fallthru
      _
    // Predicated region
    $region10: #{tpu_custom_call.1} parent=1 // pred_check
      _
    $region11: #{tpu_custom_call.1} parent=1 // pred_check_branch
      %33 = sbr.rel (0) target = $region13
    $region12: #{tpu_custom_call.1} parent=1 // pred_region
      %35 = dma.done [#allocation6], 128
    $region13: #{tpu_custom_call.1} parent=1 // pred_fallthru
      _
    // Predicated region
    $region14: #{tpu_custom_call.1} parent=1 // pred_check
      _
    $region15: #{tpu_custom_call.1} parent=1 // pred_check_branch
      %37 = sbr.rel (0) target = $region17
    $region16: #{tpu_custom_call.1} parent=1 // pred_region
      %39 = dma.done [#allocation9], 16
    $region17: #{tpu_custom_call.1} parent=1 // pred_fallthru
      _
    %p40 = scmp.eq.s32.totalorder 0, 0
    // Predicated region
    $region18: #{tpu_custom_call.1} parent=1 // pred_check
      %p41 = pneg %p40
    $region19: #{tpu_custom_call.1} parent=1 // pred_check_branch
      %43 = sbr.rel (%p41) target = $region21
    $region20: #{tpu_custom_call.1} parent=1 // pred_region
      %vm44 = vcmask 0
      %45 = vst.msk [vmem:[#allocation2] sm:$0x1] %vm44, -inf
      %46 = vst.msk [vmem:[#allocation3] sm:$0x1] %vm44, 0.0
      %vm47 = vcmask 253952
      %48 = vst.msk [vmem:[#allocation4] sm:$0x1] %vm47, 0.0
    $region21: #{tpu_custom_call.1} parent=1 // pred_fallthru
      _
    %v49 = vld [vmem:[#allocation5] sm:$0xff]
    %v50 = vld [vmem:[#allocation8] sm:$0x1]
    %vm51 = vcmask 261120
    %v53 = vsel %vm51, %v50, 0
    %v56 = vsel %vm51, %v49, 0
    %58 = vmatpush.xpose.msra.mxu0 0.0
    %59 = vmatpush.xpose.msra.mxu0 0.0
    %60 = vmatpush.xpose.msra.mxu0 0.0
    %61 = vmatpush.xpose.msra.mxu0 0.0
    %62 = vmatpush.xpose.msra.mxu0 0.0
    %63 = vmatpush.xpose.msra.mxu0 0.0
    %64 = vmatpush.xpose.msra.mxu0 0.0
    %65 = vmatpush.xpose.msra.mxu0 0.0
    %66 = vmatpush.xpose.msra.mxu0 0.0
    %67 = vmatpush.xpose.msra.mxu0 0.0
    %68 = vmatpush.xpose.msra.mxu0 0.0
    %69 = vmatpush.xpose.msra.mxu0 0.0
    %70 = vmatpush.xpose.msra.mxu0 0.0
    %71 = vmatpush.xpose.msra.mxu0 0.0
    %72 = vmatpush.xpose.msra.mxu0 0.0
    %73 = vmatpush.xpose.msra.mxu0 %v56
    %74 = vmatmul.f32.gmra.mxu0 %v53
    %v75 = vpop.f32.mrf.mxu0
    %v76 = vadd.f32 0.0, %v75
    %77 = vdwg.mxu0
    %v78 = vld [vmem:[#allocation2] sm:$0x1]
    %vm79 = vcmask 57344
    %v80 = vsel %vm79, %v76, -inf
    %81 = vmax.xlane.f32.xlu0 %v80
    %v82 = vpop.xlane.xlu0 %81
    %v83 = vmax.f32 %v78, %v82
    %v84 = vsub.f32 %v78, %v83
    %v85 = vmul.f32 %v84, 1.442695
    %v86 = vpow.pop %v85
    %88 = vset.pattern.permute.xlu0 0
    %89 = vperm.xlu0 %88, %v83
    %v90 = vpop.permute.xlu0 %89
    %v92 = vperm.slane %v90, 0
    %v93 = vsub.f32 %v76, %v92
    %v94 = vmul.f32 %v93, 1.442695
    %v95 = vpow.pop %v94
    %vm96 = vcmask 64512
    %v98 = vsel %vm96, %v95, 0
    %100 = vmatpush.msra.mxu0 0.0
    %101 = vmatpush.msra.mxu0 0.0
    %102 = vmatpush.msra.mxu0 0.0
    %103 = vmatpush.msra.mxu0 0.0
    %104 = vmatpush.msra.mxu0 0.0
    %105 = vmatpush.msra.mxu0 0.0
    %106 = vmatpush.msra.mxu0 0.0
    %107 = vmatpush.msra.mxu0 0.0
    %108 = vmatpush.msra.mxu0 0.0
    %109 = vmatpush.msra.mxu0 0.0
    %110 = vmatpush.msra.mxu0 0.0
    %111 = vmatpush.msra.mxu0 0.0
    %112 = vmatpush.msra.mxu0 0.0
    %113 = vmatpush.msra.mxu0 0.0
    %114 = vmatpush.msra.mxu0 0.0
    %115 = vmatpush.msra.mxu0 %v49
    %116 = vmatmul.f32.gmra.mxu0 %v98
    %v117 = vpop.f32.mrf.mxu0
    %v118 = vadd.f32 0.0, %v117
    %119 = vdwg.mxu0
    %v120 = vld [vmem:[#allocation3] sm:$0x1]
    %v121 = vmul.f32 %v86, %v120
    %v122 = vsel %vm79, %v95, 0.0
    %123 = vadd.xlane.f32.xlu0 %v122
    %v124 = vpop.xlane.xlu0 %123
    %v125 = vadd.f32 %v121, %v124
    %vm126 = vcmask 0
    %127 = vst.msk [vmem:[#allocation3] sm:$0x1] %vm126, %v125
    %v128 = vld [vmem:[#allocation4] sm:$0x1]
    %130 = vset.pattern.permute.xlu0 0
    %131 = vperm.xlu0 %130, %v86
    %v132 = vpop.permute.xlu0 %131
    %v134 = vperm.slane %v132, 0
    %v135 = vmul.f32 %v134, %v128
    %v136 = vadd.f32 %v135, %v118
    %vm137 = vcmask 253952
    %138 = vst.msk [vmem:[#allocation4] sm:$0x1] %vm137, %v136
    %139 = vst.msk [vmem:[#allocation2] sm:$0x1] %vm126, %v83
    // Predicated region
    $region22: #{tpu_custom_call.1} parent=1 // pred_check
      %p140 = pneg %p40
    $region23: #{tpu_custom_call.1} parent=1 // pred_check_branch
      %142 = sbr.rel (%p140) target = $region25
    $region24: #{tpu_custom_call.1} parent=1 // pred_region
      %v143 = vld [vmem:[#allocation3] sm:$0x1]
      %v144 = vrcp.pop %v143
      %v145 = vmul.f32 %v143, %v144
      %v146 = vsub.f32 1.0, %v145
      %v147 = vmul.f32 %v144, %v146
      %v148 = vadd.f32 %v144, %v147
      %vm149 = vweird.f32 %v143
      %vm150 = vweird.f32 %v144
      %vm151 = vmor %vm149, %vm150
      %v152 = vsel %vm151, %v144, %v148
      %v153 = vand.u32 2147483647, %v143
      %vm154 = vcmp.eq.f32.partialorder %v153, 8.507059e+37
      %v155 = vand.u32 %v143, 2147483648
      %v156 = vor.u32 1.1754944e-38, %v155
      %v157 = vsel %vm154, %v156, %v152
      %v158 = vld [vmem:[#allocation4] sm:$0x1]
      %160 = vset.pattern.permute.xlu0 0
      %161 = vperm.xlu0 %160, %v157
      %v162 = vpop.permute.xlu0 %161
      %v164 = vperm.slane %v162, 0
      %v165 = vmul.f32 %v158, %v164
      %166 = vst.msk [vmem:[#allocation10] sm:$0x1] %vm137, %v165
    $region25: #{tpu_custom_call.1} parent=1 // pred_fallthru
      _
    // Predicated region
    $region26: #{tpu_custom_call.1} parent=1 // pred_check
      _
    $region27: #{tpu_custom_call.1} parent=1 // pred_check_branch
      %168 = sbr.rel (0) target = $region29
    $region28: #{tpu_custom_call.1} parent=1 // pred_region
      %170 = vsyncadd [#allocation7], 0
      %s172 = sshll.u32 [#allocation10], 4
      %s173 = int_to_ptr.vmem [resolvable:$true] %s172
      %s174 = sshll.u32 %s2, 4
      %s175 = int_to_ptr.hbm [resolvable:$true] %s174
      %177 = dma.vmem_to_hbm [thread:$0]  %s173, 16, %s175, [#allocation7]
    $region29: #{tpu_custom_call.1} parent=1 // pred_fallthru
      _
    // Predicated region
    $region30: #{tpu_custom_call.1} parent=1 // pred_check
      _
    $region31: #{tpu_custom_call.1} parent=1 // pred_check_branch
      %179 = sbr.rel (0) target = $region33
    $region32: #{tpu_custom_call.1} parent=1 // pred_region
      %181 = dma.done [#allocation7], 16
    $region33: #{tpu_custom_call.1} parent=1 // pred_fallthru
      _
    %182 = vsyncpa [#allocation6], 1
    %183 = vsyncpa [#allocation9], 1
    %184 = vsyncpa [#allocation7], 1

</llo_original>
